<compile_context>
chip_gen: v5e
topology: v5e:2x2
jax: 0.10.0
libtpu: 0.0.40
codegen_flags: <defaults>
</compile_context>

<pallas_src>
import jax
import jax.numpy as jnp
from jax import lax
from jax.experimental import pallas as pl
from jax.experimental.pallas import tpu as pltpu


# ---------------- Pallas kernel ----------------

def _fused_kernel(p_ref, wc_ref, bc_ref, w1_ref, b1_ref, w2_ref, b2_ref,
                  w3_ref, b3_ref, o_ref):
    # Conv as a batched matmul, channel-major output: (NB, 32, S) f32.
    # Both operands contract their minor (27-wide patch-feature) dim.
    conv = jnp.einsum("nck,nsk->ncs", wc_ref[...], p_ref[...],
                      preferred_element_type=jnp.float32)
    nb, co, s = conv.shape
    # Rows become (n, c_out) with spatial in lanes == PyTorch NCHW flatten order.
    # (Leading-dim merge only; 32 % 8 == 0 so this is layout-preserving.)
    conv = conv.reshape(nb * co, s)
    conv = jnp.maximum(conv + bc_ref[...], 0.0)                       # bias + ReLU (f32)

    h = conv.astype(jnp.bfloat16)
    h1 = jnp.dot(h, w1_ref[...], preferred_element_type=jnp.float32) + b1_ref[...]
    h1 = jnp.maximum(h1, 0.0).astype(jnp.bfloat16)
    h2 = jnp.dot(h1, w2_ref[...], preferred_element_type=jnp.float32) + b2_ref[...]
    h2 = jnp.maximum(h2, 0.0).astype(jnp.bfloat16)
    o_ref[...] = jnp.dot(h2, w3_ref[...], preferred_element_type=jnp.float32) + b3_ref[...]


# ---------------- Glue (plain JAX) ----------------

def im2col_nhw(x, kh, kw):
    # x: (N, C, H, W) -> (N, Ho*Wo, C*kh*kw); rows = spatial (h, w),
    # columns flattened in (C, kh, kw) order to match the PyTorch weight reshape.
    N, C, H, W = x.shape
    Ho, Wo = H - kh + 1, W - kw + 1
    cols = []
    for i in range(kh):
        for j in range(kw):
            cols.append(x[:, :, i:i + Ho, j:j + Wo])      # (N, C, Ho, Wo)
    p = jnp.stack(cols, axis=2)                            # (N, C, kh*kw, Ho, Wo)
    p = p.transpose(0, 3, 4, 1, 2)                         # (N, Ho, Wo, C, kh*kw)
    return p.reshape(N, Ho * Wo, C * kh * kw)


def _block_diag(w, t):
    # w: (K, F) -> (t*K, t*F) block-diagonal (t is tiny & static).
    K, F = w.shape
    out = jnp.zeros((t * K, t * F), w.dtype)
    for b in range(t):
        out = out.at[b * K:(b + 1) * K, b * F:(b + 1) * F].set(w)
    return out


def lenet_variant_forward(x, params, *, block_images=None):
    """Reproduces LeNetVariant.forward on NCHW input x with one fused Pallas kernel."""
    N, C, H, W = x.shape
    KH = KW = 3
    Ho, Wo = H - KH + 1, W - KW + 1
    S = Ho * Wo
    CK = C * KH * KW
    # TODO(synk): general S (Ho*Wo % 32 != 0) needs a row-crossing flatten path.
    assert S % 32 == 0, "fused kernel requires Ho*Wo to be a multiple of 32"
    T = S // 32

    # Images per grid step -> ~1024 flat rows/step (fits well under 16 MiB scoped VMEM).
    if block_images is None:
        block_images = max(1, 1024 // S)
    NB = min(N, block_images)
    num_blocks = pl.cdiv(N, NB)
    N_pad = num_blocks * NB

    # im2col in plain JAX (kept outside the kernel for lowering safety).
    patches = im2col_nhw(x, KH, KW)                        # (N, S, CK) f32
    if N_pad != N:
        patches = jnp.pad(patches, ((0, N_pad - N), (0, 0), (0, 0)))
    patches = patches.astype(jnp.bfloat16)

    # Conv weight/bias prep (channel-major conv).
    w_k = params["conv_w"].reshape(32, CK).astype(jnp.bfloat16)        # (32, CK)
    w_b = jnp.broadcast_to(w_k[None], (NB, 32, CK))                    # batched lhs
    bc = jnp.tile(params["conv_b"].reshape(1, 32), (NB, 1)).reshape(NB * 32, 1)
    bc = bc.astype(jnp.float32)                                        # per-(n,c) bias column

    # Block-diagonal MLP weights implement the .view(-1, 32) semantics exactly.
    w1_big = _block_diag(params["fc1_w"].T, T).astype(jnp.bfloat16)    # (S,     T*256)
    b1_big = jnp.tile(params["fc1_b"].reshape(1, -1), (1, T)).astype(jnp.float32)
    w2_big = _block_diag(params["fc2_w"].T, T).astype(jnp.bfloat16)    # (T*256, T*64)
    b2_big = jnp.tile(params["fc2_b"].reshape(1, -1), (1, T)).astype(jnp.float32)
    w3_big = _block_diag(params["fc3_w"].T, T).astype(jnp.bfloat16)    # (T*64,  T)
    b3_big = jnp.tile(params["fc3_b"].reshape(1, -1), (1, T)).astype(jnp.float32)

    out_big = pl.pallas_call(
        _fused_kernel,
        out_shape=jax.ShapeDtypeStruct((N_pad * 32, T), jnp.float32),
        grid=(num_blocks,),
        in_specs=[
            pl.BlockSpec((NB, S, CK), lambda i: (i, 0, 0)),        # patches (per block)
            pl.BlockSpec((NB, 32, CK), lambda i: (0, 0, 0)),       # conv weight (resident)
            pl.BlockSpec((NB * 32, 1), lambda i: (0, 0)),          # conv bias column
            pl.BlockSpec((S, T * 256), lambda i: (0, 0)),          # fc1 (block-diag)
            pl.BlockSpec((1, T * 256), lambda i: (0, 0)),
            pl.BlockSpec((T * 256, T * 64), lambda i: (0, 0)),     # fc2 (block-diag)
            pl.BlockSpec((1, T * 64), lambda i: (0, 0)),
            pl.BlockSpec((T * 64, T), lambda i: (0, 0)),           # fc3 (block-diag)
            pl.BlockSpec((1, T), lambda i: (0, 0)),
        ],
        out_specs=pl.BlockSpec((NB * 32, T), lambda i: (i, 0)),
        compiler_params=pltpu.CompilerParams(
            dimension_semantics=("parallel",),
            vmem_limit_bytes=32 * 1024 * 1024,
        ),
    )(patches, w_b, bc, w1_big, b1_big, w2_big, b2_big, w3_big, b3_big)

    # Rows of out_big are (n, c, t); drop padding and flatten -> (N*S, 1),
    # exactly the PyTorch output row order.
    out = out_big.reshape(N_pad, 32, T)[:N].reshape(N * S, 1)
    return out


def reference_forward(x, params):
    """Pure-JAX f32 reference with identical semantics to the PyTorch module."""
    y = lax.conv_general_dilated(
        x, params["conv_w"], window_strides=(1, 1), padding="VALID",
        dimension_numbers=("NCHW", "OIHW", "NCHW"))
    y = jnp.maximum(y + params["conv_b"].reshape(1, 32, 1, 1), 0.0)
    flat = y.reshape(-1, 32)
    h = jnp.maximum(flat @ params["fc1_w"].T + params["fc1_b"], 0.0)
    h = jnp.maximum(h @ params["fc2_w"].T + params["fc2_b"], 0.0)
    return h @ params["fc3_w"].T + params["fc3_b"]


def init_params(key):
    ks = jax.random.split(key, 8)
    s = 0.1
    return {
        "conv_w": s * jax.random.normal(ks[0], (32, 3, 3, 3), jnp.float32),   # (out, in, kh, kw)
        "conv_b": s * jax.random.normal(ks[1], (32,), jnp.float32),
        "fc1_w": s * jax.random.normal(ks[2], (256, 32), jnp.float32),        # (out, in)
        "fc1_b": s * jax.random.normal(ks[3], (256,), jnp.float32),
        "fc2_w": s * jax.random.normal(ks[4], (64, 256), jnp.float32),
        "fc2_b": s * jax.random.normal(ks[5], (64,), jnp.float32),
        "fc3_w": s * jax.random.normal(ks[6], (1, 64), jnp.float32),
        "fc3_b": s * jax.random.normal(ks[7], (1,), jnp.float32),
    }


if __name__ == "__main__":
    key = jax.random.PRNGKey(0)
    pkey, xkey = jax.random.split(key)
    params = init_params(pkey)

    # Small input consistent with the module: N=2, C=3 (conv1 requires 3), 10x10 spatial.
    x = jax.random.normal(xkey, (2, 3, 10, 10), jnp.float32)

    fwd = jax.jit(lenet_variant_forward)
    out = jax.block_until_ready(fwd(x, params))

    ref = reference_forward(x, params)
    assert out.shape == ref.shape == (2 * 8 * 8, 1), out.shape
    # bf16 matmul inputs with f32 accumulation -> loosened tolerance vs f32 reference.
    assert jnp.allclose(out, ref, atol=3e-2, rtol=3e-2), float(jnp.max(jnp.abs(out - ref)))

    print("KERNEL_OK")
</pallas_src>

<mosaic_0001>
module attributes {stable_mosaic.version = 11 : i64} {
  func.func @_fused_kernel(%arg0: i32, %arg1: memref<2x64x27xbf16, #tpu.memory_space<vmem>>, %arg2: memref<2x32x27xbf16, #tpu.memory_space<vmem>>, %arg3: memref<64x1xf32, #tpu.memory_space<vmem>>, %arg4: memref<64x512xbf16, #tpu.memory_space<vmem>>, %arg5: memref<1x512xf32, #tpu.memory_space<vmem>>, %arg6: memref<512x128xbf16, #tpu.memory_space<vmem>>, %arg7: memref<1x128xf32, #tpu.memory_space<vmem>>, %arg8: memref<128x2xbf16, #tpu.memory_space<vmem>>, %arg9: memref<1x2xf32, #tpu.memory_space<vmem>>, %arg10: memref<64x2xf32, #tpu.memory_space<vmem>>) attributes {dimension_semantics = [#tpu.dimension_semantics<parallel>], iteration_bounds = array<i64: 1>, scalar_prefetch = 0 : i64, scratch_operands = 0 : i64, tpu.core_type = #tpu.core_type<tc>, window_params = [{transform_indices = @transform_0, window_bounds = array<i64: 2, 64, 27>}, {pipeline_mode = #tpu.pipeline_mode<synchronous>, transform_indices = @transform_1, window_bounds = array<i64: 2, 32, 27>}, {pipeline_mode = #tpu.pipeline_mode<synchronous>, transform_indices = @transform_2, window_bounds = array<i64: 64, 1>}, {pipeline_mode = #tpu.pipeline_mode<synchronous>, transform_indices = @transform_3, window_bounds = array<i64: 64, 512>}, {pipeline_mode = #tpu.pipeline_mode<synchronous>, transform_indices = @transform_4, window_bounds = array<i64: 1, 512>}, {pipeline_mode = #tpu.pipeline_mode<synchronous>, transform_indices = @transform_5, window_bounds = array<i64: 512, 128>}, {pipeline_mode = #tpu.pipeline_mode<synchronous>, transform_indices = @transform_6, window_bounds = array<i64: 1, 128>}, {pipeline_mode = #tpu.pipeline_mode<synchronous>, transform_indices = @transform_7, window_bounds = array<i64: 128, 2>}, {pipeline_mode = #tpu.pipeline_mode<synchronous>, transform_indices = @transform_8, window_bounds = array<i64: 1, 2>}, {transform_indices = @transform_9, window_bounds = array<i64: 64, 2>}]} {
    %c0 = arith.constant 0 : index
    %c0_0 = arith.constant 0 : index
    %c0_1 = arith.constant 0 : index
    %0 = vector.load %arg2[%c0, %c0_0, %c0_1] : memref<2x32x27xbf16, #tpu.memory_space<vmem>>, vector<2x32x27xbf16>
    %c0_2 = arith.constant 0 : index
    %c0_3 = arith.constant 0 : index
    %c0_4 = arith.constant 0 : index
    %1 = vector.load %arg1[%c0_2, %c0_3, %c0_4] : memref<2x64x27xbf16, #tpu.memory_space<vmem>>, vector<2x64x27xbf16>
    "tpu.trace_start"() <{level = 10 : i32, message = "nck,nsk->ncs"}> : () -> ()
    %cst = arith.constant dense<0.000000e+00> : vector<2x32x64xf32>
    %2 = tpu.matmul %0, %1, %cst {dimension_numbers = #tpu.dot_dimension_numbers<[2], [2], [1], [1], [0, 0, 0, 1, 1, 1], [0], [0]>} : vector<2x32x27xbf16>, vector<2x64x27xbf16>, vector<2x32x64xf32> -> vector<2x32x64xf32>
    "tpu.trace_stop"() : () -> ()
    %3 = vector.shape_cast %2 : vector<2x32x64xf32> to vector<64x64xf32>
    %c0_5 = arith.constant 0 : index
    %c0_6 = arith.constant 0 : index
    %4 = vector.load %arg3[%c0_5, %c0_6] : memref<64x1xf32, #tpu.memory_space<vmem>>, vector<64x1xf32>
    %5 = vector.broadcast %4 : vector<64x1xf32> to vector<64x64xf32>
    %6 = arith.addf %3, %5 : vector<64x64xf32>
    %cst_7 = arith.constant 0.000000e+00 : f32
    %7 = vector.broadcast %cst_7 : f32 to vector<64x64xf32>
    %8 = arith.maximumf %6, %7 : vector<64x64xf32>
    %9 = arith.truncf %8 : vector<64x64xf32> to vector<64x64xbf16>
    %c0_8 = arith.constant 0 : index
    %c0_9 = arith.constant 0 : index
    %10 = vector.load %arg4[%c0_8, %c0_9] : memref<64x512xbf16, #tpu.memory_space<vmem>>, vector<64x512xbf16>
    %cst_10 = arith.constant dense<0.000000e+00> : vector<64x512xf32>
    %11 = tpu.matmul %9, %10, %cst_10 {dimension_numbers = #tpu.dot_dimension_numbers<[1], [0], [0], [1], [0, 0, 1, 1], [], []>} : vector<64x64xbf16>, vector<64x512xbf16>, vector<64x512xf32> -> vector<64x512xf32>
    %c0_11 = arith.constant 0 : index
    %c0_12 = arith.constant 0 : index
    %12 = vector.load %arg5[%c0_11, %c0_12] : memref<1x512xf32, #tpu.memory_space<vmem>>, vector<1x512xf32>
    %13 = vector.broadcast %12 : vector<1x512xf32> to vector<64x512xf32>
    %14 = arith.addf %11, %13 : vector<64x512xf32>
    %cst_13 = arith.constant 0.000000e+00 : f32
    %15 = vector.broadcast %cst_13 : f32 to vector<64x512xf32>
    %16 = arith.maximumf %14, %15 : vector<64x512xf32>
    %17 = arith.truncf %16 : vector<64x512xf32> to vector<64x512xbf16>
    %c0_14 = arith.constant 0 : index
    %c0_15 = arith.constant 0 : index
    %18 = vector.load %arg6[%c0_14, %c0_15] : memref<512x128xbf16, #tpu.memory_space<vmem>>, vector<512x128xbf16>
    %cst_16 = arith.constant dense<0.000000e+00> : vector<64x128xf32>
    %19 = tpu.matmul %17, %18, %cst_16 {dimension_numbers = #tpu.dot_dimension_numbers<[1], [0], [0], [1], [0, 0, 1, 1], [], []>} : vector<64x512xbf16>, vector<512x128xbf16>, vector<64x128xf32> -> vector<64x128xf32>
    %c0_17 = arith.constant 0 : index
    %c0_18 = arith.constant 0 : index
    %20 = vector.load %arg7[%c0_17, %c0_18] : memref<1x128xf32, #tpu.memory_space<vmem>>, vector<1x128xf32>
    %21 = vector.broadcast %20 : vector<1x128xf32> to vector<64x128xf32>
    %22 = arith.addf %19, %21 : vector<64x128xf32>
    %cst_19 = arith.constant 0.000000e+00 : f32
    %23 = vector.broadcast %cst_19 : f32 to vector<64x128xf32>
    %24 = arith.maximumf %22, %23 : vector<64x128xf32>
    %25 = arith.truncf %24 : vector<64x128xf32> to vector<64x128xbf16>
    %c0_20 = arith.constant 0 : index
    %c0_21 = arith.constant 0 : index
    %26 = vector.load %arg8[%c0_20, %c0_21] : memref<128x2xbf16, #tpu.memory_space<vmem>>, vector<128x2xbf16>
    %cst_22 = arith.constant dense<0.000000e+00> : vector<64x2xf32>
    %27 = tpu.matmul %25, %26, %cst_22 {dimension_numbers = #tpu.dot_dimension_numbers<[1], [0], [0], [1], [0, 0, 1, 1], [], []>} : vector<64x128xbf16>, vector<128x2xbf16>, vector<64x2xf32> -> vector<64x2xf32>
    %c0_23 = arith.constant 0 : index
    %c0_24 = arith.constant 0 : index
    %28 = vector.load %arg9[%c0_23, %c0_24] : memref<1x2xf32, #tpu.memory_space<vmem>>, vector<1x2xf32>
    %29 = vector.broadcast %28 : vector<1x2xf32> to vector<64x2xf32>
    %30 = arith.addf %27, %29 : vector<64x2xf32>
    %c0_25 = arith.constant 0 : index
    %c0_26 = arith.constant 0 : index
    %31 = vector.load %arg10[%c0_25, %c0_26] : memref<64x2xf32, #tpu.memory_space<vmem>>, vector<64x2xf32>
    tpu.vector_store %arg10[%c0_25, %c0_26], %30 {strides = array<i32>} : memref<64x2xf32, #tpu.memory_space<vmem>>, vector<64x2xf32>,
    return
  }
  func.func @transform_0(%arg0: i32) -> (i32, i32, i32) {
    %c0_i32 = arith.constant 0 : i32
    %c0_i32_0 = arith.constant 0 : i32
    %c0_i32_1 = arith.constant 0 : i32
    return %arg0, %c0_i32, %c0_i32_0 : i32, i32, i32
  }
  func.func @transform_1(%arg0: i32) -> (i32, i32, i32) {
    %c0_i32 = arith.constant 0 : i32
    %c0_i32_0 = arith.constant 0 : i32
    %c0_i32_1 = arith.constant 0 : i32
    %c0_i32_2 = arith.constant 0 : i32
    return %c0_i32, %c0_i32_0, %c0_i32_1 : i32, i32, i32
  }
  func.func @transform_2(%arg0: i32) -> (i32, i32) {
    %c0_i32 = arith.constant 0 : i32
    %c0_i32_0 = arith.constant 0 : i32
    %c0_i32_1 = arith.constant 0 : i32
    return %c0_i32, %c0_i32_0 : i32, i32
  }
  func.func @transform_3(%arg0: i32) -> (i32, i32) {
    %c0_i32 = arith.constant 0 : i32
    %c0_i32_0 = arith.constant 0 : i32
    %c0_i32_1 = arith.constant 0 : i32
    return %c0_i32, %c0_i32_0 : i32, i32
  }
  func.func @transform_4(%arg0: i32) -> (i32, i32) {
    %c0_i32 = arith.constant 0 : i32
    %c0_i32_0 = arith.constant 0 : i32
    %c0_i32_1 = arith.constant 0 : i32
    return %c0_i32, %c0_i32_0 : i32, i32
  }
  func.func @transform_5(%arg0: i32) -> (i32, i32) {
    %c0_i32 = arith.constant 0 : i32
    %c0_i32_0 = arith.constant 0 : i32
    %c0_i32_1 = arith.constant 0 : i32
    return %c0_i32, %c0_i32_0 : i32, i32
  }
  func.func @transform_6(%arg0: i32) -> (i32, i32) {
    %c0_i32 = arith.constant 0 : i32
    %c0_i32_0 = arith.constant 0 : i32
    %c0_i32_1 = arith.constant 0 : i32
    return %c0_i32, %c0_i32_0 : i32, i32
  }
  func.func @transform_7(%arg0: i32) -> (i32, i32) {
    %c0_i32 = arith.constant 0 : i32
    %c0_i32_0 = arith.constant 0 : i32
    %c0_i32_1 = arith.constant 0 : i32
    return %c0_i32, %c0_i32_0 : i32, i32
  }
  func.func @transform_8(%arg0: i32) -> (i32, i32) {
    %c0_i32 = arith.constant 0 : i32
    %c0_i32_0 = arith.constant 0 : i32
    %c0_i32_1 = arith.constant 0 : i32
    return %c0_i32, %c0_i32_0 : i32, i32
  }
  func.func @transform_9(%arg0: i32) -> (i32, i32) {
    %c0_i32 = arith.constant 0 : i32
    %c0_i32_0 = arith.constant 0 : i32
    return %arg0, %c0_i32 : i32, i32
  }
}

</mosaic_0001>

<llo_original>
// kernel: tile.18
$region0: #{tile.18}
  #allocation0 [shape = 's32[1]{0}', space=sflag, size = 0x4, scoped, tag = 'scoped memory for tile.18']
  %s0 = inlined_call_operand.vmem [shape: f32[32], index: 0, kind: input, shape index: {}]
  %s1 = inlined_call_operand.vmem [shape: f32[2,1,1,32], index: 1, kind: output, shape index: {}]
  // Predicated region
  $region2: #{tile.18} parent=0 // pred_check
    _
  $region3: #{tile.18} parent=0 // pred_check_branch
    %3 = sbr.rel (0) target = $region5
  $region4: #{tile.18} parent=0 // pred_region
    _
  $region5: #{tile.18} parent=0 // pred_fallthru
    _
  %v4 = vld [vmem:[%s0] ss:$0 sm:$0xff]
  %5 = vst [vmem:[%s1] sm:$0x3] %v4

// kernel: tile.0
$region0: #{tile.0}
  %s0 = inlined_call_operand.vmem [shape: f32[2,1,1,32], index: 0, kind: input, shape index: {}]
  %s1 = inlined_call_operand.vmem [shape: f32[64,1], index: 1, kind: output, shape index: {}]
  $region1: #{tile.0} parent=0
    #allocation0 [shape = 'u8[4096]{0}', space=vmem, size = 0x1000, scoped, tag = 'scoped mem for input reshape']
    %s3 = ssub.s32 4, 1
    %v4 = vld [vmem:[%s0] sm:%s3]
    %5 = vst [vmem:[#allocation0] sm:%s3] %v4
    %v6 = vld [vmem:[#allocation0] sm:$0x3]
    %vm7 = vcmask 7168
    %8 = vst.msk [vmem:[%s1] sm:$0x1] %vm7, %v6
    %s9 = scalar_lea.vmem %s1, 31
    %10 = vst.msk [vmem:[%s9] sm:$0x2] %vm7, %v6
    %v11 = vld [vmem:[#allocation0] sm:$0x3]
    %12 = vrot.lane.b32.xlu0 %v11, 127
    %v13 = vpop.permute.xlu0 %12
    %vm14 = vcmask 7168
    %s15 = scalar_lea.vmem %s1, 1
    %16 = vst.msk [vmem:[%s15] sm:$0x1] %vm14, %v13
    %s17 = scalar_lea.vmem %s1, 32
    %18 = vst.msk [vmem:[%s17] sm:$0x2] %vm14, %v13
    %v19 = vld [vmem:[#allocation0] sm:$0x3]
    %20 = vrot.lane.b32.xlu0 %v19, 126
    %v21 = vpop.permute.xlu0 %20
    %vm22 = vcmask 7168
    %s23 = scalar_lea.vmem %s1, 2
    %24 = vst.msk [vmem:[%s23] sm:$0x1] %vm22, %v21
    %s25 = scalar_lea.vmem %s1, 33
    %26 = vst.msk [vmem:[%s25] sm:$0x2] %vm22, %v21
    %v27 = vld [vmem:[#allocation0] sm:$0x3]
    %28 = vrot.lane.b32.xlu0 %v27, 125
    %v29 = vpop.permute.xlu0 %28
    %vm30 = vcmask 7168
    %s31 = scalar_lea.vmem %s1, 3
    %32 = vst.msk [vmem:[%s31] sm:$0x1] %vm30, %v29
    %s33 = scalar_lea.vmem %s1, 34
    %34 = vst.msk [vmem:[%s33] sm:$0x2] %vm30, %v29
    %v35 = vld [vmem:[#allocation0] sm:$0x3]
    %36 = vrot.lane.b32.xlu0 %v35, 124
    %v37 = vpop.permute.xlu0 %36
    %vm38 = vcmask 7168
    %s39 = scalar_lea.vmem %s1, 4
    %40 = vst.msk [vmem:[%s39] sm:$0x1] %vm38, %v37
    %s41 = scalar_lea.vmem %s1, 35
    %42 = vst.msk [vmem:[%s41] sm:$0x2] %vm38, %v37
    %v43 = vld [vmem:[#allocation0] sm:$0x3]
    %44 = vrot.lane.b32.xlu0 %v43, 123
    %v45 = vpop.permute.xlu0 %44
    %vm46 = vcmask 7168
    %s47 = scalar_lea.vmem %s1, 5
    %48 = vst.msk [vmem:[%s47] sm:$0x1] %vm46, %v45
    %s49 = scalar_lea.vmem %s1, 36
    %50 = vst.msk [vmem:[%s49] sm:$0x2] %vm46, %v45
    %v51 = vld [vmem:[#allocation0] sm:$0x3]
    %52 = vrot.lane.b32.xlu0 %v51, 122
    %v53 = vpop.permute.xlu0 %52
    %vm54 = vcmask 7168
    %s55 = scalar_lea.vmem %s1, 6
    %56 = vst.msk [vmem:[%s55] sm:$0x1] %vm54, %v53
    %s57 = scalar_lea.vmem %s1, 37
    %58 = vst.msk [vmem:[%s57] sm:$0x2] %vm54, %v53
    %v59 = vld [vmem:[#allocation0] sm:$0x3]
    %60 = vrot.lane.b32.xlu0 %v59, 121
    %v61 = vpop.permute.xlu0 %60
    %vm62 = vcmask 7168
    %s63 = scalar_lea.vmem %s1, 7
    %64 = vst.msk [vmem:[%s63] sm:$0x1] %vm62, %v61
    %s65 = scalar_lea.vmem %s1, 38
    %66 = vst.msk [vmem:[%s65] sm:$0x2] %vm62, %v61
    %v67 = vld [vmem:[#allocation0] sm:$0x3]
    %68 = vrot.lane.b32.xlu0 %v67, 120
    %v69 = vpop.permute.xlu0 %68
    %vm70 = vcmask 7168
    %s71 = scalar_lea.vmem %s1, 8
    %72 = vst.msk [vmem:[%s71] sm:$0x1] %vm70, %v69
    %s73 = scalar_lea.vmem %s1, 39
    %74 = vst.msk [vmem:[%s73] sm:$0x2] %vm70, %v69
    %v75 = vld [vmem:[#allocation0] sm:$0x3]
    %76 = vrot.lane.b32.xlu0 %v75, 119
    %v77 = vpop.permute.xlu0 %76
    %vm78 = vcmask 7168
    %s79 = scalar_lea.vmem %s1, 9
    %80 = vst.msk [vmem:[%s79] sm:$0x1] %vm78, %v77
    %s81 = scalar_lea.vmem %s1, 40
    %82 = vst.msk [vmem:[%s81] sm:$0x2] %vm78, %v77
    %v83 = vld [vmem:[#allocation0] sm:$0x3]
    %84 = vrot.lane.b32.xlu0 %v83, 118
    %v85 = vpop.permute.xlu0 %84
    %vm86 = vcmask 7168
    %s87 = scalar_lea.vmem %s1, 10
    %88 = vst.msk [vmem:[%s87] sm:$0x1] %vm86, %v85
    %s89 = scalar_lea.vmem %s1, 41
    %90 = vst.msk [vmem:[%s89] sm:$0x2] %vm86, %v85
    %v91 = vld [vmem:[#allocation0] sm:$0x3]
    %92 = vrot.lane.b32.xlu0 %v91, 117
    %v93 = vpop.permute.xlu0 %92
    %vm94 = vcmask 7168
    %s95 = scalar_lea.vmem %s1, 11
    %96 = vst.msk [vmem:[%s95] sm:$0x1] %vm94, %v93
    %s97 = scalar_lea.vmem %s1, 42
    %98 = vst.msk [vmem:[%s97] sm:$0x2] %vm94, %v93
    %v99 = vld [vmem:[#allocation0] sm:$0x3]
    %100 = vrot.lane.b32.xlu0 %v99, 116
    %v101 = vpop.permute.xlu0 %100
    %vm102 = vcmask 7168
    %s103 = scalar_lea.vmem %s1, 12
    %104 = vst.msk [vmem:[%s103] sm:$0x1] %vm102, %v101
    %s105 = scalar_lea.vmem %s1, 43
    %106 = vst.msk [vmem:[%s105] sm:$0x2] %vm102, %v101
    %v107 = vld [vmem:[#allocation0] sm:$0x3]
    %108 = vrot.lane.b32.xlu0 %v107, 115
    %v109 = vpop.permute.xlu0 %108
    %vm110 = vcmask 7168
    %s111 = scalar_lea.vmem %s1, 13
    %112 = vst.msk [vmem:[%s111] sm:$0x1] %vm110, %v109
    %s113 = scalar_lea.vmem %s1, 44
    %114 = vst.msk [vmem:[%s113] sm:$0x2] %vm110, %v109
    %v115 = vld [vmem:[#allocation0] sm:$0x3]
    %116 = vrot.lane.b32.xlu0 %v115, 114
    %v117 = vpop.permute.xlu0 %116
    %vm118 = vcmask 7168
    %s119 = scalar_lea.vmem %s1, 14
    %120 = vst.msk [vmem:[%s119] sm:$0x1] %vm118, %v117
    %s121 = scalar_lea.vmem %s1, 45
    %122 = vst.msk [vmem:[%s121] sm:$0x2] %vm118, %v117
    %v123 = vld [vmem:[#allocation0] sm:$0x3]
    %124 = vrot.lane.b32.xlu0 %v123, 113
    %v125 = vpop.permute.xlu0 %124
    %vm126 = vcmask 7168
    %s127 = scalar_lea.vmem %s1, 15
    %128 = vst.msk [vmem:[%s127] sm:$0x1] %vm126, %v125
    %s129 = scalar_lea.vmem %s1, 46
    %130 = vst.msk [vmem:[%s129] sm:$0x2] %vm126, %v125
    %v131 = vld [vmem:[#allocation0] sm:$0x3]
    %132 = vrot.lane.b32.xlu0 %v131, 112
    %v133 = vpop.permute.xlu0 %132
    %vm134 = vcmask 7168
    %s135 = scalar_lea.vmem %s1, 16
    %136 = vst.msk [vmem:[%s135] sm:$0x1] %vm134, %v133
    %s137 = scalar_lea.vmem %s1, 47
    %138 = vst.msk [vmem:[%s137] sm:$0x2] %vm134, %v133
    %v139 = vld [vmem:[#allocation0] sm:$0x3]
    %140 = vrot.lane.b32.xlu0 %v139, 111
    %v141 = vpop.permute.xlu0 %140
    %vm142 = vcmask 7168
    %s143 = scalar_lea.vmem %s1, 17
    %144 = vst.msk [vmem:[%s143] sm:$0x1] %vm142, %v141
    %s145 = scalar_lea.vmem %s1, 48
    %146 = vst.msk [vmem:[%s145] sm:$0x2] %vm142, %v141
    %v147 = vld [vmem:[#allocation0] sm:$0x3]
    %148 = vrot.lane.b32.xlu0 %v147, 110
    %v149 = vpop.permute.xlu0 %148
    %vm150 = vcmask 7168
    %s151 = scalar_lea.vmem %s1, 18
    %152 = vst.msk [vmem:[%s151] sm:$0x1] %vm150, %v149
    %s153 = scalar_lea.vmem %s1, 49
    %154 = vst.msk [vmem:[%s153] sm:$0x2] %vm150, %v149
    %v155 = vld [vmem:[#allocation0] sm:$0x3]
    %156 = vrot.lane.b32.xlu0 %v155, 109
    %v157 = vpop.permute.xlu0 %156
    %vm158 = vcmask 7168
    %s159 = scalar_lea.vmem %s1, 19
    %160 = vst.msk [vmem:[%s159] sm:$0x1] %vm158, %v157
    %s161 = scalar_lea.vmem %s1, 50
    %162 = vst.msk [vmem:[%s161] sm:$0x2] %vm158, %v157
    %v163 = vld [vmem:[#allocation0] sm:$0x3]
    %164 = vrot.lane.b32.xlu0 %v163, 108
    %v165 = vpop.permute.xlu0 %164
    %vm166 = vcmask 7168
    %s167 = scalar_lea.vmem %s1, 20
    %168 = vst.msk [vmem:[%s167] sm:$0x1] %vm166, %v165
    %s169 = scalar_lea.vmem %s1, 51
    %170 = vst.msk [vmem:[%s169] sm:$0x2] %vm166, %v165
    %v171 = vld [vmem:[#allocation0] sm:$0x3]
    %172 = vrot.lane.b32.xlu0 %v171, 107
    %v173 = vpop.permute.xlu0 %172
    %vm174 = vcmask 7168
    %s175 = scalar_lea.vmem %s1, 21
    %176 = vst.msk [vmem:[%s175] sm:$0x1] %vm174, %v173
    %s177 = scalar_lea.vmem %s1, 52
    %178 = vst.msk [vmem:[%s177] sm:$0x2] %vm174, %v173
    %v179 = vld [vmem:[#allocation0] sm:$0x3]
    %180 = vrot.lane.b32.xlu0 %v179, 106
    %v181 = vpop.permute.xlu0 %180
    %vm182 = vcmask 7168
    %s183 = scalar_lea.vmem %s1, 22
    %184 = vst.msk [vmem:[%s183] sm:$0x1] %vm182, %v181
    %s185 = scalar_lea.vmem %s1, 53
    %186 = vst.msk [vmem:[%s185] sm:$0x2] %vm182, %v181
    %v187 = vld [vmem:[#allocation0] sm:$0x3]
    %188 = vrot.lane.b32.xlu0 %v187, 105
    %v189 = vpop.permute.xlu0 %188
    %vm190 = vcmask 7168
    %s191 = scalar_lea.vmem %s1, 23
    %192 = vst.msk [vmem:[%s191] sm:$0x1] %vm190, %v189
    %s193 = scalar_lea.vmem %s1, 54
    %194 = vst.msk [vmem:[%s193] sm:$0x2] %vm190, %v189
    %v195 = vld [vmem:[#allocation0] sm:$0x3]
    %196 = vrot.lane.b32.xlu0 %v195, 104
    %v197 = vpop.permute.xlu0 %196
    %vm198 = vcmask 7168
    %s199 = scalar_lea.vmem %s1, 24
    %200 = vst.msk [vmem:[%s199] sm:$0x1] %vm198, %v197
    %s201 = scalar_lea.vmem %s1, 55
    %202 = vst.msk [vmem:[%s201] sm:$0x2] %vm198, %v197
    %v203 = vld [vmem:[#allocation0] sm:$0x3]
    %204 = vrot.lane.b32.xlu0 %v203, 103
    %v205 = vpop.permute.xlu0 %204
    %vm206 = vcmask 7168
    %s207 = scalar_lea.vmem %s1, 25
    %208 = vst.msk [vmem:[%s207] sm:$0x1] %vm206, %v205
    %s209 = scalar_lea.vmem %s1, 56
    %210 = vst.msk [vmem:[%s209] sm:$0x2] %vm206, %v205
    %v211 = vld [vmem:[#allocation0] sm:$0x3]
    %212 = vrot.lane.b32.xlu0 %v211, 102
    %v213 = vpop.permute.xlu0 %212
    %vm214 = vcmask 7168
    %s215 = scalar_lea.vmem %s1, 26
    %216 = vst.msk [vmem:[%s215] sm:$0x1] %vm214, %v213
    %s217 = scalar_lea.vmem %s1, 57
    %218 = vst.msk [vmem:[%s217] sm:$0x2] %vm214, %v213
    %v219 = vld [vmem:[#allocation0] sm:$0x3]
    %220 = vrot.lane.b32.xlu0 %v219, 101
    %v221 = vpop.permute.xlu0 %220
    %vm222 = vcmask 7168
    %s223 = scalar_lea.vmem %s1, 27
    %224 = vst.msk [vmem:[%s223] sm:$0x1] %vm222, %v221
    %s225 = scalar_lea.vmem %s1, 58
    %226 = vst.msk [vmem:[%s225] sm:$0x2] %vm222, %v221
    %v227 = vld [vmem:[#allocation0] sm:$0x3]
    %228 = vrot.lane.b32.xlu0 %v227, 100
    %v229 = vpop.permute.xlu0 %228
    %vm230 = vcmask 7168
    %s231 = scalar_lea.vmem %s1, 28
    %232 = vst.msk [vmem:[%s231] sm:$0x1] %vm230, %v229
    %s233 = scalar_lea.vmem %s1, 59
    %234 = vst.msk [vmem:[%s233] sm:$0x2] %vm230, %v229
    %v235 = vld [vmem:[#allocation0] sm:$0x3]
    %236 = vrot.lane.b32.xlu0 %v235, 99
    %v237 = vpop.permute.xlu0 %236
    %vm238 = vcmask 7168
    %s239 = scalar_lea.vmem %s1, 29
    %240 = vst.msk [vmem:[%s239] sm:$0x1] %vm238, %v237
    %s241 = scalar_lea.vmem %s1, 60
    %242 = vst.msk [vmem:[%s241] sm:$0x2] %vm238, %v237
    %v243 = vld [vmem:[#allocation0] sm:$0x3]
    %244 = vrot.lane.b32.xlu0 %v243, 98
    %v245 = vpop.permute.xlu0 %244
    %vm246 = vcmask 7168
    %s247 = scalar_lea.vmem %s1, 30
    %248 = vst.msk [vmem:[%s247] sm:$0x1] %vm246, %v245
    %s249 = scalar_lea.vmem %s1, 61
    %250 = vst.msk [vmem:[%s249] sm:$0x2] %vm246, %v245
    %v251 = vld [vmem:[#allocation0] sm:$0x3]
    %252 = vrot.lane.b32.xlu0 %v251, 97
    %v253 = vpop.permute.xlu0 %252
    %vm254 = vcmask 7168
    %s255 = scalar_lea.vmem %s1, 31
    %256 = vst.msk [vmem:[%s255] sm:$0x1] %vm254, %v253
    %s257 = scalar_lea.vmem %s1, 62
    %258 = vst.msk [vmem:[%s257] sm:$0x2] %vm254, %v253

// kernel: lenet_variant_forward.1
$region0: #{lenet_variant_forward.1}
  #allocation0 [shape = 'u32[]', space=smem, size = 0x4, offset = 0x4, fixed_abs, tag = 'smem constant byte address 0x4 - core index']
  #allocation1 [shape = 'u32[72,128]{1,0:T(1,128)}', space=vmem, size = 0x9000, scoped, tag = 'internal scratch']
  %s0 = inlined_call_operand.vmem [shape: bf16[2,64,27], index: 0, kind: input, shape index: {}]
  %s1 = inlined_call_operand.vmem [shape: bf16[2,32,27], index: 1, kind: input, shape index: {}]
  %s2 = inlined_call_operand.vmem [shape: f32[64,1], index: 2, kind: input, shape index: {}]
  %s3 = inlined_call_operand.vmem [shape: bf16[64,512], index: 3, kind: input, shape index: {}]
  %s4 = inlined_call_operand.vmem [shape: f32[1,512], index: 4, kind: input, shape index: {}]
  %s5 = inlined_call_operand.vmem [shape: bf16[512,128], index: 5, kind: input, shape index: {}]
  %s6 = inlined_call_operand.vmem [shape: f32[1,128], index: 6, kind: input, shape index: {}]
  %s7 = inlined_call_operand.vmem [shape: bf16[128,2], index: 7, kind: input, shape index: {}]
  %s8 = inlined_call_operand.vmem [shape: f32[1,2], index: 8, kind: input, shape index: {}]
  %s9 = inlined_call_operand.vmem [shape: f32[64,2], index: 9, kind: output, shape index: {}]
  %s10 = sld [smem:[#allocation0]]
  $region46: #{lenet_variant_forward.1} parent=0
    _
  %s12 = ssub.s32 1, %s10
  %s13 = scalar_select 0, %s12, %s10
  // Predicated region
  $region2: #{lenet_variant_forward.1} parent=0 // pred_check
    _
  $region3: #{lenet_variant_forward.1} parent=0 // pred_check_branch
    %15 = sbr.rel (0) target = $region5
  $region4: #{lenet_variant_forward.1} parent=0 // pred_region
    _
  $region5: #{lenet_variant_forward.1} parent=0 // pred_fallthru
    _
  // Predicated region
  $region6: #{lenet_variant_forward.1} parent=0 // pred_check
    _
  $region7: #{lenet_variant_forward.1} parent=0 // pred_check_branch
    %17 = sbr.rel (0) target = $region9
  $region8: #{lenet_variant_forward.1} parent=0 // pred_region
    _
  $region9: #{lenet_variant_forward.1} parent=0 // pred_fallthru
    _
  // Predicated region
  $region10: #{lenet_variant_forward.1} parent=0 // pred_check
    _
  $region11: #{lenet_variant_forward.1} parent=0 // pred_check_branch
    %19 = sbr.rel (0) target = $region13
  $region12: #{lenet_variant_forward.1} parent=0 // pred_region
    _
  $region13: #{lenet_variant_forward.1} parent=0 // pred_fallthru
    _
  // Predicated region
  $region14: #{lenet_variant_forward.1} parent=0 // pred_check
    _
  $region15: #{lenet_variant_forward.1} parent=0 // pred_check_branch
    %21 = sbr.rel (0) target = $region17
  $region16: #{lenet_variant_forward.1} parent=0 // pred_region
    _
  $region17: #{lenet_variant_forward.1} parent=0 // pred_fallthru
    _
  // Predicated region
  $region18: #{lenet_variant_forward.1} parent=0 // pred_check
    _
  $region19: #{lenet_variant_forward.1} parent=0 // pred_check_branch
    %23 = sbr.rel (0) target = $region21
  $region20: #{lenet_variant_forward.1} parent=0 // pred_region
    _
  $region21: #{lenet_variant_forward.1} parent=0 // pred_fallthru
    _
  // Predicated region
  $region22: #{lenet_variant_forward.1} parent=0 // pred_check
    _
  $region23: #{lenet_variant_forward.1} parent=0 // pred_check_branch
    %25 = sbr.rel (0) target = $region25
  $region24: #{lenet_variant_forward.1} parent=0 // pred_region
    _
  $region25: #{lenet_variant_forward.1} parent=0 // pred_fallthru
    _
  // Predicated region
  $region26: #{lenet_variant_forward.1} parent=0 // pred_check
    _
  $region27: #{lenet_variant_forward.1} parent=0 // pred_check_branch
    %27 = sbr.rel (0) target = $region29
  $region28: #{lenet_variant_forward.1} parent=0 // pred_region
    _
  $region29: #{lenet_variant_forward.1} parent=0 // pred_fallthru
    _
  // Predicated region
  $region30: #{lenet_variant_forward.1} parent=0 // pred_check
    _
  $region31: #{lenet_variant_forward.1} parent=0 // pred_check_branch
    %29 = sbr.rel (0) target = $region33
  $region32: #{lenet_variant_forward.1} parent=0 // pred_region
    _
  $region33: #{lenet_variant_forward.1} parent=0 // pred_fallthru
    _
  // Predicated region
  $region34: #{lenet_variant_forward.1} parent=0 // pred_check
    _
  $region35: #{lenet_variant_forward.1} parent=0 // pred_check_branch
    %31 = sbr.rel (0) target = $region37
  $region36: #{lenet_variant_forward.1} parent=0 // pred_region
    _
  $region37: #{lenet_variant_forward.1} parent=0 // pred_fallthru
    _
  %v33 = vld [vmem:[%s1] sm:$0xf]
  %v34 = vld [vmem:[%s1 + $0x4] sm:$0xf]
  %v35 = vld [vmem:[%s1 + $0x8] sm:$0xf]
  %v36 = vld [vmem:[%s1 + $0xc] sm:$0xf]
  %v37 = vld [vmem:[%s1 + $0x10] sm:$0xf]
  %v38 = vld [vmem:[%s1 + $0x14] sm:$0xf]
  %v39 = vld [vmem:[%s1 + $0x18] sm:$0xf]
  %v40 = vld [vmem:[%s1 + $0x1c] sm:$0xf]
  %v41 = vld [vmem:[%s0] sm:$0xf]
  %v42 = vld [vmem:[%s0 + $0x4] sm:$0xf]
  %v43 = vld [vmem:[%s0 + $0x8] sm:$0xf]
  %v44 = vld [vmem:[%s0 + $0xc] sm:$0xf]
  %v45 = vld [vmem:[%s0 + $0x10] sm:$0xf]
  %v46 = vld [vmem:[%s0 + $0x14] sm:$0xf]
  %v47 = vld [vmem:[%s0 + $0x18] sm:$0xf]
  %v48 = vld [vmem:[%s0 + $0x1c] sm:$0xf]
  %v49 = vld [vmem:[%s0 + $0x20] sm:$0xf]
  %v50 = vld [vmem:[%s0 + $0x24] sm:$0xf]
  %v51 = vld [vmem:[%s0 + $0x28] sm:$0xf]
  %v52 = vld [vmem:[%s0 + $0x2c] sm:$0xf]
  %v53 = vld [vmem:[%s0 + $0x30] sm:$0xf]
  %v54 = vld [vmem:[%s0 + $0x34] sm:$0xf]
  %v55 = vld [vmem:[%s0 + $0x38] sm:$0xf]
  %v56 = vld [vmem:[%s0 + $0x3c] sm:$0xf]
  %v61 = vunpack.c.l.b16 %v33
  %v62 = vunpack.c.l.b16 %v34
  %v63 = vunpack.c.l.b16 %v35
  %v64 = vunpack.c.l.b16 %v36
  %v65 = vpack.c.b16 %v62, %v61
  %v66 = vpack.c.b16 %v64, %v63
  %v75 = vunpack.c.l.b16 %v41
  %v76 = vunpack.c.l.b16 %v42
  %v77 = vunpack.c.l.b16 %v43
  %v78 = vunpack.c.l.b16 %v44
  %v79 = vunpack.c.l.b16 %v45
  %v80 = vunpack.c.l.b16 %v46
  %v81 = vunpack.c.l.b16 %v47
  %v82 = vunpack.c.l.b16 %v48
  %v83 = vpack.c.b16 %v76, %v75
  %v84 = vpack.c.b16 %v78, %v77
  %v85 = vpack.c.b16 %v80, %v79
  %v86 = vpack.c.b16 %v82, %v81
  %vm87 = vcmask 220160
  %v89 = vsel %vm87, %v65, 0
  %v92 = vsel %vm87, %v66, 0
  %v95 = vsel %vm87, %v83, 0
  %v98 = vsel %vm87, %v84, 0
  %v101 = vsel %vm87, %v85, 0
  %v104 = vsel %vm87, %v86, 0
  %106 = vmatpush.bf16.xpose.msra.mxu0 0
  %107 = vmatpush.bf16.xpose.msra.mxu0 0
  %108 = vmatpush.bf16.xpose.msra.mxu0 0
  %109 = vmatpush.bf16.xpose.msra.mxu0 0
  %110 = vmatpush.bf16.xpose.msra.mxu0 %v104
  %111 = vmatpush.bf16.xpose.msra.mxu0 %v101
  %112 = vmatpush.bf16.xpose.msra.mxu0 %v98
  %113 = vmatpush.bf16.xpose.msra.mxu0 %v95
  %114 = vmatmul.bf16.gmra.mxu0 %v89
  %v115 = vpop.f32.mrf.mxu0
  %v116 = vadd.f32 0.0, %v115
  %v117 = vpop.f32.mrf.mxu0
  %v118 = vadd.f32 0.0, %v117
  %119 = vmatmul.bf16.gmra.mxu0 %v92
  %v120 = vpop.f32.mrf.mxu0
  %v121 = vadd.f32 0.0, %v120
  %v122 = vpop.f32.mrf.mxu0
  %v123 = vadd.f32 0.0, %v122
  %124 = vdwg.mxu0
  %v129 = vunpack.c.l.b16 %v37
  %v130 = vunpack.c.l.b16 %v38
  %v131 = vunpack.c.l.b16 %v39
  %v132 = vunpack.c.l.b16 %v40
  %v133 = vpack.c.b16 %v130, %v129
  %v134 = vpack.c.b16 %v132, %v131
  %v143 = vunpack.c.l.b16 %v49
  %v144 = vunpack.c.l.b16 %v50
  %v145 = vunpack.c.l.b16 %v51
  %v146 = vunpack.c.l.b16 %v52
  %v147 = vunpack.c.l.b16 %v53
  %v148 = vunpack.c.l.b16 %v54
  %v149 = vunpack.c.l.b16 %v55
  %v150 = vunpack.c.l.b16 %v56
  %v151 = vpack.c.b16 %v144, %v143
  %v152 = vpack.c.b16 %v146, %v145
  %v153 = vpack.c.b16 %v148, %v147
  %v154 = vpack.c.b16 %v150, %v149
  %v156 = vsel %vm87, %v133, 0
  %v159 = vsel %vm87, %v134, 0
  %v162 = vsel %vm87, %v151, 0
  %v165 = vsel %vm87, %v152, 0
  %v168 = vsel %vm87, %v153, 0
  %v171 = vsel %vm87, %v154, 0
  %173 = vmatpush.bf16.xpose.msra.mxu0 0
  %174 = vmatpush.bf16.xpose.msra.mxu0 0
  %175 = vmatpush.bf16.xpose.msra.mxu0 0
  %176 = vmatpush.bf16.xpose.msra.mxu0 0
  %177 = vmatpush.bf16.xpose.msra.mxu0 %v171
  %178 = vmatpush.bf16.xpose.msra.mxu0 %v168
  %179 = vmatpush.bf16.xpose.msra.mxu0 %v165
  %180 = vmatpush.bf16.xpose.msra.mxu0 %v162
  %181 = vmatmul.bf16.gmra.mxu0 %v156
  %v182 = vpop.f32.mrf.mxu0
  %v183 = vadd.f32 0.0, %v182
  %v184 = vpop.f32.mrf.mxu0
  %v185 = vadd.f32 0.0, %v184
  %186 = vmatmul.bf16.gmra.mxu0 %v159
  %v187 = vpop.f32.mrf.mxu0
  %v188 = vadd.f32 0.0, %v187
  %v189 = vpop.f32.mrf.mxu0
  %v190 = vadd.f32 0.0, %v189
  %191 = vdwg.mxu0
  %v192 = vld [vmem:[%s2] sm:$0xff]
  %v193 = vld [vmem:[%s2 + $0x8] sm:$0xff]
  %v194 = vld [vmem:[%s2 + $0x10] sm:$0xff]
  %v195 = vld [vmem:[%s2 + $0x18] sm:$0xff]
  %v196 = vld [vmem:[%s2 + $0x20] sm:$0xff]
  %v197 = vld [vmem:[%s2 + $0x28] sm:$0xff]
  %v198 = vld [vmem:[%s2 + $0x30] sm:$0xff]
  %v199 = vld [vmem:[%s2 + $0x38] sm:$0xff]
  %201 = vset.pattern.permute.xlu0 0
  %202 = vperm.xlu0 %201, %v192
  %v203 = vpop.permute.xlu0 %202
  %206 = vset.pattern.permute.xlu0 0
  %207 = vperm.xlu0 %206, %v193
  %v208 = vpop.permute.xlu0 %207
  %211 = vset.pattern.permute.xlu0 0
  %212 = vperm.xlu0 %211, %v194
  %v213 = vpop.permute.xlu0 %212
  %216 = vset.pattern.permute.xlu0 0
  %217 = vperm.xlu0 %216, %v195
  %v218 = vpop.permute.xlu0 %217
  %221 = vset.pattern.permute.xlu0 0
  %222 = vperm.xlu0 %221, %v196
  %v223 = vpop.permute.xlu0 %222
  %226 = vset.pattern.permute.xlu0 0
  %227 = vperm.xlu0 %226, %v197
  %v228 = vpop.permute.xlu0 %227
  %231 = vset.pattern.permute.xlu0 0
  %232 = vperm.xlu0 %231, %v198
  %v233 = vpop.permute.xlu0 %232
  %236 = vset.pattern.permute.xlu0 0
  %237 = vperm.xlu0 %236, %v199
  %v238 = vpop.permute.xlu0 %237
  %v240 = vadd.f32 %v116, %v203
  %v241 = vadd.f32 %v118, %v208
  %v242 = vadd.f32 %v121, %v213
  %v243 = vadd.f32 %v123, %v218
  %v244 = vadd.f32 %v183, %v223
  %v245 = vadd.f32 %v185, %v228
  %v246 = vadd.f32 %v188, %v233
  %v247 = vadd.f32 %v190, %v238
  %v248 = vmax.f32 %v240, 0.0
  %v249 = vmax.f32 %v241, 0.0
  %v250 = vmax.f32 %v242, 0.0
  %v251 = vmax.f32 %v243, 0.0
  %v252 = vmax.f32 %v244, 0.0
  %v253 = vmax.f32 %v245, 0.0
  %v254 = vmax.f32 %v246, 0.0
  %v255 = vmax.f32 %v247, 0.0
  %v256 = vpack.c.bf16 %v249, %v248
  %v257 = vpack.c.bf16 %v251, %v250
  %v258 = vpack.c.bf16 %v253, %v252
  %v259 = vpack.c.bf16 %v255, %v254
  %v260 = vld [vmem:[%s3] sm:$0xff]
  %v261 = vld [vmem:[%s3 + $0x8] sm:$0xff]
  %v262 = vld [vmem:[%s3 + $0x10] sm:$0xff]
  %v263 = vld [vmem:[%s3 + $0x18] sm:$0xff]
  %v264 = vld [vmem:[%s3 + $0x20] sm:$0xff]
  %v265 = vld [vmem:[%s3 + $0x28] sm:$0xff]
  %v266 = vld [vmem:[%s3 + $0x30] sm:$0xff]
  %v267 = vld [vmem:[%s3 + $0x38] sm:$0xff]
  %v268 = vld [vmem:[%s3 + $0x40] sm:$0xff]
  %v269 = vld [vmem:[%s3 + $0x48] sm:$0xff]
  %v270 = vld [vmem:[%s3 + $0x50] sm:$0xff]
  %v271 = vld [vmem:[%s3 + $0x58] sm:$0xff]
  %v272 = vld [vmem:[%s3 + $0x60] sm:$0xff]
  %v273 = vld [vmem:[%s3 + $0x68] sm:$0xff]
  %v274 = vld [vmem:[%s3 + $0x70] sm:$0xff]
  %v275 = vld [vmem:[%s3 + $0x78] sm:$0xff]
  %v276 = vld [vmem:[%s4] sm:$0xf]
  %v278 = vperm.slane %v276, 0
  %v279 = vperm.slane %v276, 1
  %v280 = vperm.slane %v276, 2
  %v281 = vperm.slane %v276, 3
  %v302 = vunpack.c.l.b16 %v260
  %v303 = vunpack.c.h.b16 %v260
  %v304 = vunpack.c.l.b16 %v261
  %v305 = vunpack.c.h.b16 %v261
  %v306 = vunpack.c.l.b16 %v262
  %v307 = vunpack.c.h.b16 %v262
  %v308 = vunpack.c.l.b16 %v263
  %v309 = vunpack.c.h.b16 %v263
  %v310 = vunpack.c.l.b16 %v264
  %v311 = vunpack.c.h.b16 %v264
  %v312 = vunpack.c.l.b16 %v265
  %v313 = vunpack.c.h.b16 %v265
  %v314 = vunpack.c.l.b16 %v266
  %v315 = vunpack.c.h.b16 %v266
  %v316 = vunpack.c.l.b16 %v267
  %v317 = vunpack.c.h.b16 %v267
  %v318 = vunpack.c.l.b16 %v268
  %v319 = vunpack.c.h.b16 %v268
  %v320 = vunpack.c.l.b16 %v269
  %v321 = vunpack.c.h.b16 %v269
  %v322 = vunpack.c.l.b16 %v270
  %v323 = vunpack.c.h.b16 %v270
  %v324 = vunpack.c.l.b16 %v271
  %v325 = vunpack.c.h.b16 %v271
  %v326 = vunpack.c.l.b16 %v272
  %v327 = vunpack.c.h.b16 %v272
  %v328 = vunpack.c.l.b16 %v273
  %v329 = vunpack.c.h.b16 %v273
  %v330 = vunpack.c.l.b16 %v274
  %v331 = vunpack.c.h.b16 %v274
  %v332 = vunpack.c.l.b16 %v275
  %v333 = vunpack.c.h.b16 %v275
  %v334 = vpack.c.b16 %v306, %v302
  %v335 = vpack.c.b16 %v307, %v303
  %v336 = vpack.c.b16 %v308, %v304
  %v337 = vpack.c.b16 %v309, %v305
  %v338 = vpack.c.b16 %v314, %v310
  %v339 = vpack.c.b16 %v315, %v311
  %v340 = vpack.c.b16 %v316, %v312
  %v341 = vpack.c.b16 %v317, %v313
  %v342 = vpack.c.b16 %v322, %v318
  %v343 = vpack.c.b16 %v323, %v319
  %v344 = vpack.c.b16 %v324, %v320
  %v345 = vpack.c.b16 %v325, %v321
  %v346 = vpack.c.b16 %v330, %v326
  %v347 = vpack.c.b16 %v331, %v327
  %v348 = vpack.c.b16 %v332, %v328
  %v349 = vpack.c.b16 %v333, %v329
  %vm366 = vcmask 523264
  %v368 = vsel %vm366, %v256, 0
  %v371 = vsel %vm366, %v257, 0
  %v374 = vsel %vm366, %v258, 0
  %v377 = vsel %vm366, %v259, 0
  %379 = vmatpush.bf16.msra.mxu0 0
  %380 = vmatpush.bf16.msra.mxu0 0
  %381 = vmatpush.bf16.msra.mxu0 0
  %382 = vmatpush.bf16.msra.mxu0 0
  %383 = vmatpush.bf16.msra.mxu0 %v346
  %384 = vmatpush.bf16.msra.mxu0 %v342
  %385 = vmatpush.bf16.msra.mxu0 %v338
  %386 = vmatpush.bf16.msra.mxu0 %v334
  %387 = vmatmul.bf16.gmra.mxu0 %v368
  %v388 = vpop.f32.mrf.mxu0
  %v389 = vadd.f32 %v278, %v388
  %v390 = vpop.f32.mrf.mxu0
  %v391 = vadd.f32 %v278, %v390
  %392 = vmatmul.bf16.gmra.mxu0 %v371
  %v393 = vpop.f32.mrf.mxu0
  %v394 = vadd.f32 %v278, %v393
  %v395 = vpop.f32.mrf.mxu0
  %v396 = vadd.f32 %v278, %v395
  %397 = vmatmul.bf16.gmra.mxu0 %v374
  %v398 = vpop.f32.mrf.mxu0
  %v399 = vadd.f32 %v278, %v398
  %v400 = vpop.f32.mrf.mxu0
  %v401 = vadd.f32 %v278, %v400
  %402 = vmatmul.bf16.gmra.mxu0 %v377
  %v403 = vpop.f32.mrf.mxu0
  %v404 = vadd.f32 %v278, %v403
  %v405 = vpop.f32.mrf.mxu0
  %v406 = vadd.f32 %v278, %v405
  %407 = vdwg.mxu0
  %408 = vmatpush.bf16.msra.mxu0 0
  %409 = vmatpush.bf16.msra.mxu0 0
  %410 = vmatpush.bf16.msra.mxu0 0
  %411 = vmatpush.bf16.msra.mxu0 0
  %412 = vmatpush.bf16.msra.mxu0 %v347
  %413 = vmatpush.bf16.msra.mxu0 %v343
  %414 = vmatpush.bf16.msra.mxu0 %v339
  %415 = vmatpush.bf16.msra.mxu0 %v335
  %416 = vmatmul.bf16.gmra.mxu0 %v368
  %v417 = vpop.f32.mrf.mxu0
  %v418 = vadd.f32 %v279, %v417
  %v419 = vpop.f32.mrf.mxu0
  %v420 = vadd.f32 %v279, %v419
  %421 = vmatmul.bf16.gmra.mxu0 %v371
  %v422 = vpop.f32.mrf.mxu0
  %v423 = vadd.f32 %v279, %v422
  %v424 = vpop.f32.mrf.mxu0
  %v425 = vadd.f32 %v279, %v424
  %426 = vmatmul.bf16.gmra.mxu0 %v374
  %v427 = vpop.f32.mrf.mxu0
  %v428 = vadd.f32 %v279, %v427
  %v429 = vpop.f32.mrf.mxu0
  %v430 = vadd.f32 %v279, %v429
  %431 = vmatmul.bf16.gmra.mxu0 %v377
  %v432 = vpop.f32.mrf.mxu0
  %v433 = vadd.f32 %v279, %v432
  %v434 = vpop.f32.mrf.mxu0
  %v435 = vadd.f32 %v279, %v434
  %436 = vdwg.mxu0
  %437 = vmatpush.bf16.msra.mxu0 0
  %438 = vmatpush.bf16.msra.mxu0 0
  %439 = vmatpush.bf16.msra.mxu0 0
  %440 = vmatpush.bf16.msra.mxu0 0
  %441 = vmatpush.bf16.msra.mxu0 %v348
  %442 = vmatpush.bf16.msra.mxu0 %v344
  %443 = vmatpush.bf16.msra.mxu0 %v340
  %444 = vmatpush.bf16.msra.mxu0 %v336
  %445 = vmatmul.bf16.gmra.mxu0 %v368
  %v446 = vpop.f32.mrf.mxu0
  %v447 = vadd.f32 %v280, %v446
  %v448 = vpop.f32.mrf.mxu0
  %v449 = vadd.f32 %v280, %v448
  %450 = vmatmul.bf16.gmra.mxu0 %v371
  %v451 = vpop.f32.mrf.mxu0
  %v452 = vadd.f32 %v280, %v451
  %v453 = vpop.f32.mrf.mxu0
  %v454 = vadd.f32 %v280, %v453
  %455 = vmatmul.bf16.gmra.mxu0 %v374
  %v456 = vpop.f32.mrf.mxu0
  %v457 = vadd.f32 %v280, %v456
  %v458 = vpop.f32.mrf.mxu0
  %v459 = vadd.f32 %v280, %v458
  %460 = vmatmul.bf16.gmra.mxu0 %v377
  %v461 = vpop.f32.mrf.mxu0
  %v462 = vadd.f32 %v280, %v461
  %v463 = vpop.f32.mrf.mxu0
  %v464 = vadd.f32 %v280, %v463
  %465 = vdwg.mxu0
  %466 = vmatpush.bf16.msra.mxu0 0
  %467 = vmatpush.bf16.msra.mxu0 0
  %468 = vmatpush.bf16.msra.mxu0 0
  %469 = vmatpush.bf16.msra.mxu0 0
  %470 = vmatpush.bf16.msra.mxu0 %v349
  %471 = vmatpush.bf16.msra.mxu0 %v345
  %472 = vmatpush.bf16.msra.mxu0 %v341
  %473 = vmatpush.bf16.msra.mxu0 %v337
  %474 = vmatmul.bf16.gmra.mxu0 %v368
  %v475 = vpop.f32.mrf.mxu0
  %v476 = vadd.f32 %v281, %v475
  %v477 = vpop.f32.mrf.mxu0
  %v478 = vadd.f32 %v281, %v477
  %479 = vmatmul.bf16.gmra.mxu0 %v371
  %v480 = vpop.f32.mrf.mxu0
  %v481 = vadd.f32 %v281, %v480
  %v482 = vpop.f32.mrf.mxu0
  %v483 = vadd.f32 %v281, %v482
  %484 = vmatmul.bf16.gmra.mxu0 %v374
  %v485 = vpop.f32.mrf.mxu0
  %v486 = vadd.f32 %v281, %v485
  %v487 = vpop.f32.mrf.mxu0
  %v488 = vadd.f32 %v281, %v487
  %489 = vmatmul.bf16.gmra.mxu0 %v377
  %v490 = vpop.f32.mrf.mxu0
  %v491 = vadd.f32 %v281, %v490
  %v492 = vpop.f32.mrf.mxu0
  %v493 = vadd.f32 %v281, %v492
  %494 = vdwg.mxu0
  %v495 = vmax.f32 %v389, 0.0
  %v496 = vmax.f32 %v418, 0.0
  %v497 = vmax.f32 %v447, 0.0
  %v498 = vmax.f32 %v476, 0.0
  %v499 = vmax.f32 %v391, 0.0
  %v500 = vmax.f32 %v420, 0.0
  %v501 = vmax.f32 %v449, 0.0
  %v502 = vmax.f32 %v478, 0.0
  %v503 = vmax.f32 %v394, 0.0
  %v504 = vmax.f32 %v423, 0.0
  %v505 = vmax.f32 %v452, 0.0
  %v506 = vmax.f32 %v481, 0.0
  %v507 = vmax.f32 %v396, 0.0
  %v508 = vmax.f32 %v425, 0.0
  %v509 = vmax.f32 %v454, 0.0
  %v510 = vmax.f32 %v483, 0.0
  %v511 = vmax.f32 %v399, 0.0
  %v512 = vmax.f32 %v428, 0.0
  %v513 = vmax.f32 %v457, 0.0
  %v514 = vmax.f32 %v486, 0.0
  %v515 = vmax.f32 %v401, 0.0
  %v516 = vmax.f32 %v430, 0.0
  %v517 = vmax.f32 %v459, 0.0
  %v518 = vmax.f32 %v488, 0.0
  %v519 = vmax.f32 %v404, 0.0
  %v520 = vmax.f32 %v433, 0.0
  %v521 = vmax.f32 %v462, 0.0
  %v522 = vmax.f32 %v491, 0.0
  %v523 = vmax.f32 %v406, 0.0
  %v524 = vmax.f32 %v435, 0.0
  %v525 = vmax.f32 %v464, 0.0
  %v526 = vmax.f32 %v493, 0.0
  %v527 = vpack.c.bf16 %v499, %v495
  %v528 = vpack.c.bf16 %v500, %v496
  %v529 = vpack.c.bf16 %v501, %v497
  %v530 = vpack.c.bf16 %v502, %v498
  %v531 = vpack.c.bf16 %v507, %v503
  %v532 = vpack.c.bf16 %v508, %v504
  %v533 = vpack.c.bf16 %v509, %v505
  %v534 = vpack.c.bf16 %v510, %v506
  %v535 = vpack.c.bf16 %v515, %v511
  %v536 = vpack.c.bf16 %v516, %v512
  %v537 = vpack.c.bf16 %v517, %v513
  %v538 = vpack.c.bf16 %v518, %v514
  %v539 = vpack.c.bf16 %v523, %v519
  %v540 = vpack.c.bf16 %v524, %v520
  %v541 = vpack.c.bf16 %v525, %v521
  %v542 = vpack.c.bf16 %v526, %v522
  %v543 = vld [vmem:[%s5] sm:$0xf]
  %v544 = vld [vmem:[%s5 + $0x4] sm:$0xf]
  %v545 = vld [vmem:[%s5 + $0x8] sm:$0xf]
  %v546 = vld [vmem:[%s5 + $0xc] sm:$0xf]
  %v547 = vld [vmem:[%s5 + $0x10] sm:$0xf]
  %v548 = vld [vmem:[%s5 + $0x14] sm:$0xf]
  %v549 = vld [vmem:[%s5 + $0x18] sm:$0xf]
  %v550 = vld [vmem:[%s5 + $0x1c] sm:$0xf]
  %v551 = vld [vmem:[%s5 + $0x20] sm:$0xf]
  %v552 = vld [vmem:[%s5 + $0x24] sm:$0xf]
  %v553 = vld [vmem:[%s5 + $0x28] sm:$0xf]
  %v554 = vld [vmem:[%s5 + $0x2c] sm:$0xf]
  %v555 = vld [vmem:[%s5 + $0x30] sm:$0xf]
  %v556 = vld [vmem:[%s5 + $0x34] sm:$0xf]
  %v557 = vld [vmem:[%s5 + $0x38] sm:$0xf]
  %v558 = vld [vmem:[%s5 + $0x3c] sm:$0xf]
  %v559 = vld [vmem:[%s5 + $0x40] sm:$0xf]
  %v560 = vld [vmem:[%s5 + $0x44] sm:$0xf]
  %v561 = vld [vmem:[%s5 + $0x48] sm:$0xf]
  %v562 = vld [vmem:[%s5 + $0x4c] sm:$0xf]
  %v563 = vld [vmem:[%s5 + $0x50] sm:$0xf]
  %v564 = vld [vmem:[%s5 + $0x54] sm:$0xf]
  %v565 = vld [vmem:[%s5 + $0x58] sm:$0xf]
  %v566 = vld [vmem:[%s5 + $0x5c] sm:$0xf]
  %v567 = vld [vmem:[%s5 + $0x60] sm:$0xf]
  %v568 = vld [vmem:[%s5 + $0x64] sm:$0xf]
  %v569 = vld [vmem:[%s5 + $0x68] sm:$0xf]
  %v570 = vld [vmem:[%s5 + $0x6c] sm:$0xf]
  %v571 = vld [vmem:[%s5 + $0x70] sm:$0xf]
  %v572 = vld [vmem:[%s5 + $0x74] sm:$0xf]
  %v573 = vld [vmem:[%s5 + $0x78] sm:$0xf]
  %v574 = vld [vmem:[%s5 + $0x7c] sm:$0xf]
  %v575 = vld [vmem:[%s5 + $0x80] sm:$0xf]
  %v576 = vld [vmem:[%s5 + $0x84] sm:$0xf]
  %v577 = vld [vmem:[%s5 + $0x88] sm:$0xf]
  %v578 = vld [vmem:[%s5 + $0x8c] sm:$0xf]
  %v579 = vld [vmem:[%s5 + $0x90] sm:$0xf]
  %v580 = vld [vmem:[%s5 + $0x94] sm:$0xf]
  %v581 = vld [vmem:[%s5 + $0x98] sm:$0xf]
  %v582 = vld [vmem:[%s5 + $0x9c] sm:$0xf]
  %v583 = vld [vmem:[%s5 + $0xa0] sm:$0xf]
  %v584 = vld [vmem:[%s5 + $0xa4] sm:$0xf]
  %v585 = vld [vmem:[%s5 + $0xa8] sm:$0xf]
  %v586 = vld [vmem:[%s5 + $0xac] sm:$0xf]
  %v587 = vld [vmem:[%s5 + $0xb0] sm:$0xf]
  %v588 = vld [vmem:[%s5 + $0xb4] sm:$0xf]
  %v589 = vld [vmem:[%s5 + $0xb8] sm:$0xf]
  %v590 = vld [vmem:[%s5 + $0xbc] sm:$0xf]
  %v591 = vld [vmem:[%s5 + $0xc0] sm:$0xf]
  %v592 = vld [vmem:[%s5 + $0xc4] sm:$0xf]
  %v593 = vld [vmem:[%s5 + $0xc8] sm:$0xf]
  %v594 = vld [vmem:[%s5 + $0xcc] sm:$0xf]
  %v595 = vld [vmem:[%s5 + $0xd0] sm:$0xf]
  %v596 = vld [vmem:[%s5 + $0xd4] sm:$0xf]
  %v597 = vld [vmem:[%s5 + $0xd8] sm:$0xf]
  %v598 = vld [vmem:[%s5 + $0xdc] sm:$0xf]
  %v599 = vld [vmem:[%s5 + $0xe0] sm:$0xf]
  %v600 = vld [vmem:[%s5 + $0xe4] sm:$0xf]
  %v601 = vld [vmem:[%s5 + $0xe8] sm:$0xf]
  %v602 = vld [vmem:[%s5 + $0xec] sm:$0xf]
  %v603 = vld [vmem:[%s5 + $0xf0] sm:$0xf]
  %v604 = vld [vmem:[%s5 + $0xf4] sm:$0xf]
  %v605 = vld [vmem:[%s5 + $0xf8] sm:$0xf]
  %v606 = vld [vmem:[%s5 + $0xfc] sm:$0xf]
  %v607 = vld [vmem:[%s6] sm:$0x1]
  %v609 = vperm.slane %v607, 0
  %v675 = vunpack.c.l.b16 %v543
  %v676 = vunpack.c.l.b16 %v544
  %v677 = vunpack.c.l.b16 %v545
  %v678 = vunpack.c.l.b16 %v546
  %v679 = vunpack.c.l.b16 %v547
  %v680 = vunpack.c.l.b16 %v548
  %v681 = vunpack.c.l.b16 %v549
  %v682 = vunpack.c.l.b16 %v550
  %v683 = vunpack.c.l.b16 %v551
  %v684 = vunpack.c.l.b16 %v552
  %v685 = vunpack.c.l.b16 %v553
  %v686 = vunpack.c.l.b16 %v554
  %v687 = vunpack.c.l.b16 %v555
  %v688 = vunpack.c.l.b16 %v556
  %v689 = vunpack.c.l.b16 %v557
  %v690 = vunpack.c.l.b16 %v558
  %v691 = vunpack.c.l.b16 %v559
  %v692 = vunpack.c.l.b16 %v560
  %v693 = vunpack.c.l.b16 %v561
  %v694 = vunpack.c.l.b16 %v562
  %v695 = vunpack.c.l.b16 %v563
  %v696 = vunpack.c.l.b16 %v564
  %v697 = vunpack.c.l.b16 %v565
  %v698 = vunpack.c.l.b16 %v566
  %v699 = vunpack.c.l.b16 %v567
  %v700 = vunpack.c.l.b16 %v568
  %v701 = vunpack.c.l.b16 %v569
  %v702 = vunpack.c.l.b16 %v570
  %v703 = vunpack.c.l.b16 %v571
  %v704 = vunpack.c.l.b16 %v572
  %v705 = vunpack.c.l.b16 %v573
  %v706 = vunpack.c.l.b16 %v574
  %v707 = vunpack.c.l.b16 %v575
  %v708 = vunpack.c.l.b16 %v576
  %v709 = vunpack.c.l.b16 %v577
  %v710 = vunpack.c.l.b16 %v578
  %v711 = vunpack.c.l.b16 %v579
  %v712 = vunpack.c.l.b16 %v580
  %v713 = vunpack.c.l.b16 %v581
  %v714 = vunpack.c.l.b16 %v582
  %v715 = vunpack.c.l.b16 %v583
  %v716 = vunpack.c.l.b16 %v584
  %v717 = vunpack.c.l.b16 %v585
  %v718 = vunpack.c.l.b16 %v586
  %v719 = vunpack.c.l.b16 %v587
  %v720 = vunpack.c.l.b16 %v588
  %v721 = vunpack.c.l.b16 %v589
  %v722 = vunpack.c.l.b16 %v590
  %v723 = vunpack.c.l.b16 %v591
  %v724 = vunpack.c.l.b16 %v592
  %v725 = vunpack.c.l.b16 %v593
  %v726 = vunpack.c.l.b16 %v594
  %v727 = vunpack.c.l.b16 %v595
  %v728 = vunpack.c.l.b16 %v596
  %v729 = vunpack.c.l.b16 %v597
  %v730 = vunpack.c.l.b16 %v598
  %v731 = vunpack.c.l.b16 %v599
  %v732 = vunpack.c.l.b16 %v600
  %v733 = vunpack.c.l.b16 %v601
  %v734 = vunpack.c.l.b16 %v602
  %v735 = vunpack.c.l.b16 %v603
  %v736 = vunpack.c.l.b16 %v604
  %v737 = vunpack.c.l.b16 %v605
  %v738 = vunpack.c.l.b16 %v606
  %v739 = vpack.c.b16 %v676, %v675
  %v740 = vpack.c.b16 %v678, %v677
  %v741 = vpack.c.b16 %v680, %v679
  %v742 = vpack.c.b16 %v682, %v681
  %v743 = vpack.c.b16 %v684, %v683
  %v744 = vpack.c.b16 %v686, %v685
  %v745 = vpack.c.b16 %v688, %v687
  %v746 = vpack.c.b16 %v690, %v689
  %v747 = vpack.c.b16 %v692, %v691
  %v748 = vpack.c.b16 %v694, %v693
  %v749 = vpack.c.b16 %v696, %v695
  %v750 = vpack.c.b16 %v698, %v697
  %v751 = vpack.c.b16 %v700, %v699
  %v752 = vpack.c.b16 %v702, %v701
  %v753 = vpack.c.b16 %v704, %v703
  %v754 = vpack.c.b16 %v706, %v705
  %v755 = vpack.c.b16 %v708, %v707
  %v756 = vpack.c.b16 %v710, %v709
  %v757 = vpack.c.b16 %v712, %v711
  %v758 = vpack.c.b16 %v714, %v713
  %v759 = vpack.c.b16 %v716, %v715
  %v760 = vpack.c.b16 %v718, %v717
  %v761 = vpack.c.b16 %v720, %v719
  %v762 = vpack.c.b16 %v722, %v721
  %v763 = vpack.c.b16 %v724, %v723
  %v764 = vpack.c.b16 %v726, %v725
  %v765 = vpack.c.b16 %v728, %v727
  %v766 = vpack.c.b16 %v730, %v729
  %v767 = vpack.c.b16 %v732, %v731
  %v768 = vpack.c.b16 %v734, %v733
  %v769 = vpack.c.b16 %v736, %v735
  %v770 = vpack.c.b16 %v738, %v737
  %803 = vmatpush.bf16.msra.mxu0 %v746
  %804 = vmatpush.bf16.msra.mxu0 %v745
  %805 = vmatpush.bf16.msra.mxu0 %v744
  %806 = vmatpush.bf16.msra.mxu0 %v743
  %807 = vmatpush.bf16.msra.mxu0 %v742
  %808 = vmatpush.bf16.msra.mxu0 %v741
  %809 = vmatpush.bf16.msra.mxu0 %v740
  %810 = vmatpush.bf16.msra.mxu0 %v739
  %811 = vmatmul.bf16.gmra.mxu0 %v527
  %v812 = vpop.f32.mrf.mxu0
  %v813 = vadd.f32 %v609, %v812
  %v814 = vpop.f32.mrf.mxu0
  %v815 = vadd.f32 %v609, %v814
  %816 = vmatmul.bf16.gmra.mxu0 %v531
  %v817 = vpop.f32.mrf.mxu0
  %v818 = vadd.f32 %v609, %v817
  %v819 = vpop.f32.mrf.mxu0
  %v820 = vadd.f32 %v609, %v819
  %821 = vmatmul.bf16.gmra.mxu0 %v535
  %v822 = vpop.f32.mrf.mxu0
  %v823 = vadd.f32 %v609, %v822
  %v824 = vpop.f32.mrf.mxu0
  %v825 = vadd.f32 %v609, %v824
  %826 = vmatmul.bf16.gmra.mxu0 %v539
  %v827 = vpop.f32.mrf.mxu0
  %v828 = vadd.f32 %v609, %v827
  %v829 = vpop.f32.mrf.mxu0
  %v830 = vadd.f32 %v609, %v829
  %831 = vdwg.mxu0
  %832 = vmatpush.bf16.msra.mxu0 %v754
  %833 = vmatpush.bf16.msra.mxu0 %v753
  %834 = vmatpush.bf16.msra.mxu0 %v752
  %835 = vmatpush.bf16.msra.mxu0 %v751
  %836 = vmatpush.bf16.msra.mxu0 %v750
  %837 = vmatpush.bf16.msra.mxu0 %v749
  %838 = vmatpush.bf16.msra.mxu0 %v748
  %839 = vmatpush.bf16.msra.mxu0 %v747
  %840 = vmatmul.bf16.gmra.mxu0 %v528
  %v841 = vpop.f32.mrf.mxu0
  %v842 = vadd.f32 %v813, %v841
  %v843 = vpop.f32.mrf.mxu0
  %v844 = vadd.f32 %v815, %v843
  %845 = vmatmul.bf16.gmra.mxu0 %v532
  %v846 = vpop.f32.mrf.mxu0
  %v847 = vadd.f32 %v818, %v846
  %v848 = vpop.f32.mrf.mxu0
  %v849 = vadd.f32 %v820, %v848
  %850 = vmatmul.bf16.gmra.mxu0 %v536
  %v851 = vpop.f32.mrf.mxu0
  %v852 = vadd.f32 %v823, %v851
  %v853 = vpop.f32.mrf.mxu0
  %v854 = vadd.f32 %v825, %v853
  %855 = vmatmul.bf16.gmra.mxu0 %v540
  %v856 = vpop.f32.mrf.mxu0
  %v857 = vadd.f32 %v828, %v856
  %v858 = vpop.f32.mrf.mxu0
  %v859 = vadd.f32 %v830, %v858
  %860 = vdwg.mxu0
  %861 = vmatpush.bf16.msra.mxu0 %v762
  %862 = vmatpush.bf16.msra.mxu0 %v761
  %863 = vmatpush.bf16.msra.mxu0 %v760
  %864 = vmatpush.bf16.msra.mxu0 %v759
  %865 = vmatpush.bf16.msra.mxu0 %v758
  %866 = vmatpush.bf16.msra.mxu0 %v757
  %867 = vmatpush.bf16.msra.mxu0 %v756
  %868 = vmatpush.bf16.msra.mxu0 %v755
  %869 = vmatmul.bf16.gmra.mxu0 %v529
  %v870 = vpop.f32.mrf.mxu0
  %v871 = vadd.f32 %v842, %v870
  %v872 = vpop.f32.mrf.mxu0
  %v873 = vadd.f32 %v844, %v872
  %874 = vmatmul.bf16.gmra.mxu0 %v533
  %v875 = vpop.f32.mrf.mxu0
  %v876 = vadd.f32 %v847, %v875
  %v877 = vpop.f32.mrf.mxu0
  %v878 = vadd.f32 %v849, %v877
  %879 = vmatmul.bf16.gmra.mxu0 %v537
  %v880 = vpop.f32.mrf.mxu0
  %v881 = vadd.f32 %v852, %v880
  %v882 = vpop.f32.mrf.mxu0
  %v883 = vadd.f32 %v854, %v882
  %884 = vmatmul.bf16.gmra.mxu0 %v541
  %v885 = vpop.f32.mrf.mxu0
  %v886 = vadd.f32 %v857, %v885
  %v887 = vpop.f32.mrf.mxu0
  %v888 = vadd.f32 %v859, %v887
  %889 = vdwg.mxu0
  %890 = vmatpush.bf16.msra.mxu0 %v770
  %891 = vmatpush.bf16.msra.mxu0 %v769
  %892 = vmatpush.bf16.msra.mxu0 %v768
  %893 = vmatpush.bf16.msra.mxu0 %v767
  %894 = vmatpush.bf16.msra.mxu0 %v766
  %895 = vmatpush.bf16.msra.mxu0 %v765
  %896 = vmatpush.bf16.msra.mxu0 %v764
  %897 = vmatpush.bf16.msra.mxu0 %v763
  %898 = vmatmul.bf16.gmra.mxu0 %v530
  %v899 = vpop.f32.mrf.mxu0
  %v900 = vadd.f32 %v871, %v899
  %v901 = vpop.f32.mrf.mxu0
  %v902 = vadd.f32 %v873, %v901
  %903 = vmatmul.bf16.gmra.mxu0 %v534
  %v904 = vpop.f32.mrf.mxu0
  %v905 = vadd.f32 %v876, %v904
  %v906 = vpop.f32.mrf.mxu0
  %v907 = vadd.f32 %v878, %v906
  %908 = vmatmul.bf16.gmra.mxu0 %v538
  %v909 = vpop.f32.mrf.mxu0
  %v910 = vadd.f32 %v881, %v909
  %v911 = vpop.f32.mrf.mxu0
  %v912 = vadd.f32 %v883, %v911
  %913 = vmatmul.bf16.gmra.mxu0 %v542
  %v914 = vpop.f32.mrf.mxu0
  %v915 = vadd.f32 %v886, %v914
  %v916 = vpop.f32.mrf.mxu0
  %v917 = vadd.f32 %v888, %v916
  %918 = vdwg.mxu0
  %v919 = vmax.f32 %v900, 0.0
  %v920 = vmax.f32 %v902, 0.0
  %v921 = vmax.f32 %v905, 0.0
  %v922 = vmax.f32 %v907, 0.0
  %v923 = vmax.f32 %v910, 0.0
  %v924 = vmax.f32 %v912, 0.0
  %v925 = vmax.f32 %v915, 0.0
  %v926 = vmax.f32 %v917, 0.0
  %v927 = vpack.c.bf16 %v920, %v919
  %v928 = vpack.c.bf16 %v922, %v921
  %v929 = vpack.c.bf16 %v924, %v923
  %v930 = vpack.c.bf16 %v926, %v925
  %v931 = vld [vmem:[%s7] sm:$0xf]
  %v932 = vld [vmem:[%s7 + $0x4] sm:$0xf]
  %v933 = vld [vmem:[%s7 + $0x8] sm:$0xf]
  %v934 = vld [vmem:[%s7 + $0xc] sm:$0xf]
  %v935 = vld [vmem:[%s7 + $0x10] sm:$0xf]
  %v936 = vld [vmem:[%s7 + $0x14] sm:$0xf]
  %v937 = vld [vmem:[%s7 + $0x18] sm:$0xf]
  %v938 = vld [vmem:[%s7 + $0x1c] sm:$0xf]
  %v939 = vld [vmem:[%s7 + $0x20] sm:$0xf]
  %v940 = vld [vmem:[%s7 + $0x24] sm:$0xf]
  %v941 = vld [vmem:[%s7 + $0x28] sm:$0xf]
  %v942 = vld [vmem:[%s7 + $0x2c] sm:$0xf]
  %v943 = vld [vmem:[%s7 + $0x30] sm:$0xf]
  %v944 = vld [vmem:[%s7 + $0x34] sm:$0xf]
  %v945 = vld [vmem:[%s7 + $0x38] sm:$0xf]
  %v946 = vld [vmem:[%s7 + $0x3c] sm:$0xf]
  %v947 = vld [vmem:[%s8] sm:$0x1]
  %v949 = vperm.slane %v947, 0
  %v967 = vunpack.c.l.b16 %v931
  %v968 = vunpack.c.l.b16 %v932
  %v969 = vunpack.c.l.b16 %v933
  %v970 = vunpack.c.l.b16 %v934
  %v971 = vunpack.c.l.b16 %v935
  %v972 = vunpack.c.l.b16 %v936
  %v973 = vunpack.c.l.b16 %v937
  %v974 = vunpack.c.l.b16 %v938
  %v975 = vunpack.c.l.b16 %v939
  %v976 = vunpack.c.l.b16 %v940
  %v977 = vunpack.c.l.b16 %v941
  %v978 = vunpack.c.l.b16 %v942
  %v979 = vunpack.c.l.b16 %v943
  %v980 = vunpack.c.l.b16 %v944
  %v981 = vunpack.c.l.b16 %v945
  %v982 = vunpack.c.l.b16 %v946
  %v983 = vpack.c.b16 %v968, %v967
  %v984 = vpack.c.b16 %v970, %v969
  %v985 = vpack.c.b16 %v972, %v971
  %v986 = vpack.c.b16 %v974, %v973
  %v987 = vpack.c.b16 %v976, %v975
  %v988 = vpack.c.b16 %v978, %v977
  %v989 = vpack.c.b16 %v980, %v979
  %v990 = vpack.c.b16 %v982, %v981
  %999 = vmatpush.bf16.msra.mxu0 %v990
  %1000 = vmatpush.bf16.msra.mxu0 %v989
  %1001 = vmatpush.bf16.msra.mxu0 %v988
  %1002 = vmatpush.bf16.msra.mxu0 %v987
  %1003 = vmatpush.bf16.msra.mxu0 %v986
  %1004 = vmatpush.bf16.msra.mxu0 %v985
  %1005 = vmatpush.bf16.msra.mxu0 %v984
  %1006 = vmatpush.bf16.msra.mxu0 %v983
  %1007 = vmatmul.bf16.gmra.mxu0 %v927
  %v1008 = vpop.f32.mrf.mxu0
  %v1009 = vadd.f32 %v949, %v1008
  %v1010 = vpop.f32.mrf.mxu0
  %v1011 = vadd.f32 %v949, %v1010
  %1012 = vmatmul.bf16.gmra.mxu0 %v928
  %v1013 = vpop.f32.mrf.mxu0
  %v1014 = vadd.f32 %v949, %v1013
  %v1015 = vpop.f32.mrf.mxu0
  %v1016 = vadd.f32 %v949, %v1015
  %1017 = vmatmul.bf16.gmra.mxu0 %v929
  %v1018 = vpop.f32.mrf.mxu0
  %v1019 = vadd.f32 %v949, %v1018
  %v1020 = vpop.f32.mrf.mxu0
  %v1021 = vadd.f32 %v949, %v1020
  %1022 = vmatmul.bf16.gmra.mxu0 %v930
  %v1023 = vpop.f32.mrf.mxu0
  %v1024 = vadd.f32 %v949, %v1023
  %v1025 = vpop.f32.mrf.mxu0
  %v1026 = vadd.f32 %v949, %v1025
  %1027 = vdwg.mxu0
  %vm1028 = vcmask 15360
  %1029 = vst.msk [vmem:[%s9] sm:$0xff] %vm1028, %v1009
  %1030 = vst.msk [vmem:[%s9 + $0x8] sm:$0xff] %vm1028, %v1011
  %1031 = vst.msk [vmem:[%s9 + $0x10] sm:$0xff] %vm1028, %v1014
  %1032 = vst.msk [vmem:[%s9 + $0x18] sm:$0xff] %vm1028, %v1016
  %1033 = vst.msk [vmem:[%s9 + $0x20] sm:$0xff] %vm1028, %v1019
  %1034 = vst.msk [vmem:[%s9 + $0x28] sm:$0xff] %vm1028, %v1021
  %1035 = vst.msk [vmem:[%s9 + $0x30] sm:$0xff] %vm1028, %v1024
  %1036 = vst.msk [vmem:[%s9 + $0x38] sm:$0xff] %vm1028, %v1026
  // Predicated region
  $region38: #{lenet_variant_forward.1} parent=0 // pred_check
    _
  $region39: #{lenet_variant_forward.1} parent=0 // pred_check_branch
    %1038 = sbr.rel (0) target = $region41
  $region40: #{lenet_variant_forward.1} parent=0 // pred_region
    _
  $region41: #{lenet_variant_forward.1} parent=0 // pred_fallthru
    _
  // Predicated region
  $region42: #{lenet_variant_forward.1} parent=0 // pred_check
    _
  $region43: #{lenet_variant_forward.1} parent=0 // pred_check_branch
    %1040 = sbr.rel (0) target = $region45
  $region44: #{lenet_variant_forward.1} parent=0 // pred_region
    _
  $region45: #{lenet_variant_forward.1} parent=0 // pred_fallthru
    _

</llo_original>
